<compile_context>
chip_gen: v6e
topology: v6e:2x2x1
jax: 0.10.0
libtpu: 0.0.40
codegen_flags: <defaults>
</compile_context>

<pallas_src>
import jax
import jax.numpy as jnp
from jax.experimental import pallas as pl
from jax.experimental.pallas import tpu as pltpu


def linear_kernel(x_ref, w_ref, b_ref, o_ref):
    # x_ref: (1, TB)   w_ref: (OUT, 1)   b_ref: (OUT, 1)   o_ref: (OUT, TB)
    # Pure VPU broadcast multiply-add; no MXU push/pop for a K=1 contraction.
    o_ref[...] = w_ref[...] * x_ref[...] + b_ref[...]


def linear_forward(x, w, b, *, block_b=2048):
    """Forward pass of nn.Linear(1, 10).

    x: (B, 1) f32      (PyTorch input layout)
    w: (OUT, IN) f32   (PyTorch weight layout, IN == 1)
    b: (OUT,) f32
    returns (B, OUT) f32 == x @ w.T + b
    """
    B, IN = x.shape
    OUT = w.shape[0]
    assert IN == 1 and w.shape[1] == 1

    # Lane-dense layout: put B on the 128-lane axis inside the kernel.
    x_row = x.reshape(1, B)      # free reshape (IN == 1)
    w_col = w.reshape(OUT, 1)
    b_col = b.reshape(OUT, 1)

    # Batch tile: full array if small, otherwise a multiple of 128
    # (block_b=2048 keeps double-buffered tiles tiny even under v7x's
    #  64 MiB VMEM; raise freely if desired).
    if B <= block_b:
        tb = B
    else:
        tb = block_b  # multiple of 128; Pallas masks any partial edge block

    grid = (pl.cdiv(B, tb),)

    out_t = pl.pallas_call(
        linear_kernel,
        out_shape=jax.ShapeDtypeStruct((OUT, B), jnp.float32),
        grid=grid,
        in_specs=[
            pl.BlockSpec((1, tb), lambda i: (0, i)),      # x slice, pipelined
            pl.BlockSpec((OUT, 1), lambda i: (0, 0)),     # W resident in VMEM
            pl.BlockSpec((OUT, 1), lambda i: (0, 0)),     # b resident in VMEM
        ],
        out_specs=pl.BlockSpec((OUT, tb), lambda i: (0, i)),
        compiler_params=pltpu.CompilerParams(
            dimension_semantics=("parallel",)  # batch tiles are independent
        ),
    )(x_row, w_col, b_col)

    # Back to the PyTorch layout (B, OUT).
    return out_t.T


if __name__ == "__main__":
    key = jax.random.PRNGKey(0)
    k_x, k_w, k_b, k_x2 = jax.random.split(key, 4)

    IN, OUT = 1, 10

    # Deterministic PyTorch-style init: uniform(-1/sqrt(fan_in), 1/sqrt(fan_in))
    bound = 1.0 / (IN ** 0.5)
    w = jax.random.uniform(k_w, (OUT, IN), jnp.float32, -bound, bound)  # (out, in)
    b = jax.random.uniform(k_b, (OUT,), jnp.float32, -bound, bound)

    # --- Small batch (single-block path), matches the module's typical use ---
    B = 8
    x = jax.random.normal(k_x, (B, IN), jnp.float32)
    out = jax.block_until_ready(linear_forward(x, w, b))
    ref = x @ w.T + b
    assert out.shape == (B, OUT)
    assert jnp.allclose(out, ref, atol=1e-5, rtol=1e-5)

    # --- Larger batch exercising the tiled, pipelined grid path ---
    B2 = 512
    x2 = jax.random.normal(k_x2, (B2, IN), jnp.float32)
    out2 = jax.block_until_ready(linear_forward(x2, w, b, block_b=128))
    ref2 = x2 @ w.T + b
    assert out2.shape == (B2, OUT)
    assert jnp.allclose(out2, ref2, atol=1e-5, rtol=1e-5)

    print("KERNEL_OK")
</pallas_src>

<mosaic_0001>
module attributes {stable_mosaic.version = 11 : i64} {
  func.func @linear_kernel(%arg0: i32, %arg1: memref<1x8xf32, #tpu.memory_space<vmem>>, %arg2: memref<10x1xf32, #tpu.memory_space<vmem>>, %arg3: memref<10x1xf32, #tpu.memory_space<vmem>>, %arg4: memref<10x8xf32, #tpu.memory_space<vmem>>) attributes {dimension_semantics = [#tpu.dimension_semantics<parallel>], iteration_bounds = array<i64: 1>, scalar_prefetch = 0 : i64, scratch_operands = 0 : i64, tpu.core_type = #tpu.core_type<tc>, window_params = [{transform_indices = @transform_0, window_bounds = array<i64: 1, 8>}, {pipeline_mode = #tpu.pipeline_mode<synchronous>, transform_indices = @transform_1, window_bounds = array<i64: 10, 1>}, {pipeline_mode = #tpu.pipeline_mode<synchronous>, transform_indices = @transform_2, window_bounds = array<i64: 10, 1>}, {transform_indices = @transform_3, window_bounds = array<i64: 10, 8>}]} {
    %c0 = arith.constant 0 : index
    %c0_0 = arith.constant 0 : index
    %0 = vector.load %arg2[%c0, %c0_0] : memref<10x1xf32, #tpu.memory_space<vmem>>, vector<10x1xf32>
    %c0_1 = arith.constant 0 : index
    %c0_2 = arith.constant 0 : index
    %1 = vector.load %arg1[%c0_1, %c0_2] : memref<1x8xf32, #tpu.memory_space<vmem>>, vector<1x8xf32>
    %2 = vector.broadcast %0 : vector<10x1xf32> to vector<10x8xf32>
    %3 = vector.broadcast %1 : vector<1x8xf32> to vector<10x8xf32>
    %4 = arith.mulf %2, %3 : vector<10x8xf32>
    %c0_3 = arith.constant 0 : index
    %c0_4 = arith.constant 0 : index
    %5 = vector.load %arg3[%c0_3, %c0_4] : memref<10x1xf32, #tpu.memory_space<vmem>>, vector<10x1xf32>
    %6 = vector.broadcast %5 : vector<10x1xf32> to vector<10x8xf32>
    %7 = arith.addf %4, %6 : vector<10x8xf32>
    %c0_5 = arith.constant 0 : index
    %c0_6 = arith.constant 0 : index
    %8 = vector.load %arg4[%c0_5, %c0_6] : memref<10x8xf32, #tpu.memory_space<vmem>>, vector<10x8xf32>
    tpu.vector_store %arg4[%c0_5, %c0_6], %7 {strides = array<i32>} : memref<10x8xf32, #tpu.memory_space<vmem>>, vector<10x8xf32>,
    return
  }
  func.func @transform_0(%arg0: i32) -> (i32, i32) {
    %c0_i32 = arith.constant 0 : i32
    %c0_i32_0 = arith.constant 0 : i32
    return %c0_i32, %arg0 : i32, i32
  }
  func.func @transform_1(%arg0: i32) -> (i32, i32) {
    %c0_i32 = arith.constant 0 : i32
    %c0_i32_0 = arith.constant 0 : i32
    %c0_i32_1 = arith.constant 0 : i32
    return %c0_i32, %c0_i32_0 : i32, i32
  }
  func.func @transform_2(%arg0: i32) -> (i32, i32) {
    %c0_i32 = arith.constant 0 : i32
    %c0_i32_0 = arith.constant 0 : i32
    %c0_i32_1 = arith.constant 0 : i32
    return %c0_i32, %c0_i32_0 : i32, i32
  }
  func.func @transform_3(%arg0: i32) -> (i32, i32) {
    %c0_i32 = arith.constant 0 : i32
    %c0_i32_0 = arith.constant 0 : i32
    return %c0_i32, %arg0 : i32, i32
  }
}

</mosaic_0001>

<llo_original>
// kernel: tpu_custom_call.1
$region0: #{tpu_custom_call.1}
  #allocation0 [shape = 'u32[]', space=smem, size = 0x4, offset = 0x4, fixed_abs, tag = 'smem constant byte address 0x4 - core index']
  #allocation1 [shape = 'u32[144,128]{1,0:T(1,128)}', space=vmem, size = 0x12000, scoped, tag = 'internal scratch']
  %s0 = inlined_call_operand.vmem [shape: f32[1,8], index: 0, kind: input, shape index: {}]
  %s1 = inlined_call_operand.vmem [shape: f32[10,1], index: 1, kind: input, shape index: {}]
  %s2 = inlined_call_operand.vmem [shape: f32[10,1], index: 2, kind: input, shape index: {}]
  %s3 = inlined_call_operand.vmem [shape: f32[10,8], index: 3, kind: output, shape index: {}]
  %s4 = sld [smem:[#allocation0]]
  $region22: #{tpu_custom_call.1} parent=0
    _
  %s6 = ssub.s32 1, %s4
  %s7 = scalar_select 0, %s6, %s4
  // Predicated region
  $region2: #{tpu_custom_call.1} parent=0 // pred_check
    _
  $region3: #{tpu_custom_call.1} parent=0 // pred_check_branch
    %9 = sbr.rel (0) target = $region5
  $region4: #{tpu_custom_call.1} parent=0 // pred_region
    _
  $region5: #{tpu_custom_call.1} parent=0 // pred_fallthru
    _
  // Predicated region
  $region6: #{tpu_custom_call.1} parent=0 // pred_check
    _
  $region7: #{tpu_custom_call.1} parent=0 // pred_check_branch
    %11 = sbr.rel (0) target = $region9
  $region8: #{tpu_custom_call.1} parent=0 // pred_region
    _
  $region9: #{tpu_custom_call.1} parent=0 // pred_fallthru
    _
  // Predicated region
  $region10: #{tpu_custom_call.1} parent=0 // pred_check
    _
  $region11: #{tpu_custom_call.1} parent=0 // pred_check_branch
    %13 = sbr.rel (0) target = $region13
  $region12: #{tpu_custom_call.1} parent=0 // pred_region
    _
  $region13: #{tpu_custom_call.1} parent=0 // pred_fallthru
    _
  %v14 = vld [vmem:[%s1] sm:$0xff]
  %v15 = vld [vmem:[%s1 + $0x8] sm:$0x3]
  %v16 = vld [vmem:[%s0] sm:$0x1]
  %18 = vset.pattern.permute.xlu0 0
  %19 = vperm.xlu0 %18, %v14
  %v20 = vpop.permute.xlu0 %19
  %23 = vset.pattern.permute.xlu0 0
  %24 = vperm.xlu0 %23, %v15
  %v25 = vpop.permute.xlu0 %24
  %v28 = vlaneseq
  %v29 = vshrl.u32 %v28, 7
  %v30 = vsub.s32 0, %v29
  %v31 = vrot.slane %v16, %v30
  %v33 = vmul.f32 %v20, %v31
  %v34 = vmul.f32 %v25, %v31
  %v35 = vld [vmem:[%s2] sm:$0xff]
  %v36 = vld [vmem:[%s2 + $0x8] sm:$0x3]
  %38 = vset.pattern.permute.xlu0 0
  %39 = vperm.xlu0 %38, %v35
  %v40 = vpop.permute.xlu0 %39
  %43 = vset.pattern.permute.xlu0 0
  %44 = vperm.xlu0 %43, %v36
  %v45 = vpop.permute.xlu0 %44
  %v47 = vadd.f32 %v33, %v40
  %v48 = vadd.f32 %v34, %v45
  %vm49 = vcmask 64512
  %50 = vst.msk [vmem:[%s3] sm:$0xff] %vm49, %v47
  %vm51 = vcmask 58368
  %52 = vst.msk [vmem:[%s3 + $0x8] sm:$0x3] %vm51, %v48
  // Predicated region
  $region14: #{tpu_custom_call.1} parent=0 // pred_check
    _
  $region15: #{tpu_custom_call.1} parent=0 // pred_check_branch
    %54 = sbr.rel (0) target = $region17
  $region16: #{tpu_custom_call.1} parent=0 // pred_region
    _
  $region17: #{tpu_custom_call.1} parent=0 // pred_fallthru
    _
  // Predicated region
  $region18: #{tpu_custom_call.1} parent=0 // pred_check
    _
  $region19: #{tpu_custom_call.1} parent=0 // pred_check_branch
    %56 = sbr.rel (0) target = $region21
  $region20: #{tpu_custom_call.1} parent=0 // pred_region
    _
  $region21: #{tpu_custom_call.1} parent=0 // pred_fallthru
    _

</llo_original>
